<compile_context>
chip_gen: v7x
topology: tpu7x:2x2x1
jax: 0.10.0
libtpu: 0.0.40
codegen_flags: <defaults>
</compile_context>

<pallas_src>
import functools

import jax
import jax.numpy as jnp
from jax.experimental import pallas as pl
from jax.experimental.pallas import tpu as pltpu


# ----------------------------------------------------------------------------
# Fused kernel: global max-pool -> fc1 -> LeakyReLU -> fc2 -> sigmoid -> scale
# ----------------------------------------------------------------------------

def _cb_kernel(x_ref, w1_ref, w2_ref, o_ref, *, negative_slope, spatial_axis,
               use_mxu):
    # Global max pool over the spatial axis -> (Bt, C).
    # Read x_ref here and again at the store instead of binding the full tile:
    # re-reading VMEM is cheap and keeps vreg live ranges short across the MLP.
    mx = jnp.max(x_ref[...], axis=spatial_axis)                     # (Bt, C)

    if use_mxu:
        # Weights arrive as (in, out); MXU matmuls with M = Bt rows.
        h = jnp.dot(mx, w1_ref[...], preferred_element_type=jnp.float32)
        h = jnp.where(h > 0.0, h, negative_slope * h)
        s = jnp.dot(h, w2_ref[...], preferred_element_type=jnp.float32)
    else:
        # Tiny C / Cr: VPU path (broadcast-multiply + lane reduction) avoids the
        # MXU push/pop latency of an M<8 matmul.  Weights arrive in PyTorch
        # (out, in) layout so the contraction sits on the lane (last) axis.
        h = jnp.sum(mx[:, None, :] * w1_ref[...][None, :, :], axis=-1)   # (Bt, Cr)
        h = jnp.where(h > 0.0, h, negative_slope * h)
        s = jnp.sum(h[:, None, :] * w2_ref[...][None, :, :], axis=-1)    # (Bt, C)

    # Exact sigmoid for parity with torch.sigmoid (the gate is only (Bt, C)).
    gate = 1.0 / (1.0 + jnp.exp(-s))                                 # (Bt, C)

    # Scale every spatial location of each channel by its gate.
    if spatial_axis == 2:      # layout (Bt, C, HW): spatial on lanes
        o_ref[...] = x_ref[...] * gate[:, :, None]
    else:                      # layout (Bt, HW, C): channels on lanes
        o_ref[...] = x_ref[...] * gate[:, None, :]


# ----------------------------------------------------------------------------
# Block sizing
# ----------------------------------------------------------------------------

def _pick_batch_block(n, elem_bytes):
    """Batch elements per grid step.

    Target ~0.5 MiB+ blocks (amortize per-step overhead), cap at ~4 MiB so in+out
    double buffering (~4x block) stays inside a 32 MiB scoped-VMEM budget on every
    generation (v7x has only 64 MiB physical), and keep >=4 grid steps when that
    does not shrink blocks below ~256 KiB (megacore / pipeline depth).
    """
    target = 512 * 1024
    cap = 4 * 1024 * 1024
    bt = min(n, max(1, cap // elem_bytes), max(1, -(-target // elem_bytes)))
    while bt > 1 and n // bt < 4 and (bt // 2) * elem_bytes >= 256 * 1024:
        bt //= 2
    while n % bt:              # prefer a divisor of n: no padded trailing block
        bt -= 1
    return bt


# ----------------------------------------------------------------------------
# Wrapper
# ----------------------------------------------------------------------------

def cb_forward(inputs, w1, w2, *, negative_slope=0.01):
    """CB forward pass.

    inputs: (N, C, H, W) float32, NCHW.
    w1: fc1 weight, PyTorch nn.Linear layout (C // ratio, C)  -- (out, in), no bias.
    w2: fc2 weight, PyTorch nn.Linear layout (C, C // ratio)  -- (out, in), no bias.
    """
    n, c, h, w = inputs.shape
    hw = h * w
    cr, c_in = w1.shape
    assert c_in == c and w2.shape == (c, cr), (inputs.shape, w1.shape, w2.shape)

    # Internal layout: prefer spatial on lanes (free reshape from NCHW).  If hw is
    # not a multiple of 128 but C is, put channels on lanes instead so the large
    # output stores stay unmasked (lane-dense out_spec is the biggest store lever).
    channels_on_lanes = (hw % 128 != 0) and (c % 128 == 0)
    if channels_on_lanes:
        x = jnp.transpose(inputs.reshape(n, c, hw), (0, 2, 1))       # (N, HW, C)
        spatial_axis = 1
        block_tail = (hw, c)
    else:
        x = inputs.reshape(n, c, hw)                                  # (N, C, HW)
        spatial_axis = 2
        block_tail = (c, hw)

    elem_bytes = c * hw * x.dtype.itemsize
    bt = _pick_batch_block(n, elem_bytes)
    block = (bt,) + block_tail

    # MLP path: VPU for tiny problems (broadcast intermediate <= ~32 KiB of f32),
    # MXU otherwise.  Weight layout is chosen to match the path.
    use_mxu = bt * c * cr > 8192
    if use_mxu:
        w1_k, w2_k = w1.T, w2.T        # (in, out) for jnp.dot
    else:
        w1_k, w2_k = w1, w2            # PyTorch (out, in); kernel contracts last axes

    cost = pl.CostEstimate(
        flops=4 * n * c * cr + 2 * n * c * hw,          # two tiny matmuls + pool + scale
        transcendentals=n * c,                          # exp in the sigmoid
        bytes_accessed=2 * n * c * hw * x.dtype.itemsize + 2 * c * cr * 4,
    )

    out = pl.pallas_call(
        functools.partial(_cb_kernel, negative_slope=negative_slope,
                          spatial_axis=spatial_axis, use_mxu=use_mxu),
        out_shape=jax.ShapeDtypeStruct(x.shape, x.dtype),
        grid=(n // bt,),
        in_specs=[
            pl.BlockSpec(block, lambda i: (i, 0, 0)),        # Bt batch elements / step
            pl.BlockSpec(w1_k.shape, lambda i: (0, 0)),      # fc1 weight (full, tiny)
            pl.BlockSpec(w2_k.shape, lambda i: (0, 0)),      # fc2 weight (full, tiny)
        ],
        out_specs=pl.BlockSpec(block, lambda i: (i, 0, 0)),
        input_output_aliases={0: 0},     # each x block fully read before o block lands
        compiler_params=pltpu.CompilerParams(
            dimension_semantics=("parallel",),               # megacore over batch blocks
            vmem_limit_bytes=32 * 1024 * 1024,               # > v5e 16MiB default, < v7x 64MiB
        ),
        cost_estimate=cost,
    )(x, w1_k, w2_k)

    if channels_on_lanes:
        out = jnp.transpose(out, (0, 2, 1))
    return out.reshape(n, c, h, w)


# ----------------------------------------------------------------------------

if __name__ == "__main__":
    N, C, H, W = 2, 8, 16, 16
    RATIO = 4
    CR = C // RATIO

    key = jax.random.PRNGKey(0)
    kx, k1, k2 = jax.random.split(key, 3)

    x = jax.random.normal(kx, (N, C, H, W), jnp.float32)              # NCHW input
    # PyTorch nn.Linear layout: (out_features, in_features), bias-free.
    w1 = jax.random.normal(k1, (CR, C), jnp.float32) * 0.1
    w2 = jax.random.normal(k2, (C, CR), jnp.float32) * 0.1

    # Pure-JAX reference (computed before the donating call consumes x's buffer).
    mx_ref = jnp.max(x.reshape(N, C, H * W), axis=-1)
    h_ref = mx_ref @ w1.T
    h_ref = jnp.where(h_ref > 0.0, h_ref, 0.01 * h_ref)
    s_ref = h_ref @ w2.T
    ref = jax.block_until_ready(x * jax.nn.sigmoid(s_ref)[:, :, None, None])

    cb = jax.jit(cb_forward, donate_argnums=(0,))
    out = jax.block_until_ready(cb(x, w1, w2))

    assert out.shape == (N, C, H, W), out.shape
    assert jnp.all(jnp.isfinite(out)), "non-finite output"
    assert jnp.allclose(out, ref, rtol=1e-5, atol=1e-5), "mismatch vs reference"
    print("KERNEL_OK")
</pallas_src>

<mosaic_0001>
module attributes {stable_mosaic.version = 11 : i64} {
  func.func @_cb_kernel(%arg0: i32, %arg1: memref<2x8x256xf32, #tpu.memory_space<vmem>>, %arg2: memref<2x8xf32, #tpu.memory_space<vmem>>, %arg3: memref<8x2xf32, #tpu.memory_space<vmem>>, %arg4: memref<2x8x256xf32, #tpu.memory_space<vmem>>) attributes {dimension_semantics = [#tpu.dimension_semantics<parallel>], iteration_bounds = array<i64: 1>, scalar_prefetch = 0 : i64, scratch_operands = 0 : i64, tpu.core_type = #tpu.core_type<tc>, window_params = [{transform_indices = @transform_0, window_bounds = array<i64: 2, 8, 256>}, {pipeline_mode = #tpu.pipeline_mode<synchronous>, transform_indices = @transform_1, window_bounds = array<i64: 2, 8>}, {pipeline_mode = #tpu.pipeline_mode<synchronous>, transform_indices = @transform_2, window_bounds = array<i64: 8, 2>}, {transform_indices = @transform_3, window_bounds = array<i64: 2, 8, 256>}]} {
    %c0 = arith.constant 0 : index
    %c0_0 = arith.constant 0 : index
    %c0_1 = arith.constant 0 : index
    %0 = vector.load %arg1[%c0, %c0_0, %c0_1] : memref<2x8x256xf32, #tpu.memory_space<vmem>>, vector<2x8x256xf32>
    %cst = arith.constant dense<0xFF800000> : vector<2x8xf32>
    %1 = vector.multi_reduction <maximumf>, %0, %cst [2] : vector<2x8x256xf32> to vector<2x8xf32>
    %2 = vector.shape_cast %1 : vector<2x8xf32> to vector<2x1x8xf32>
    %c0_2 = arith.constant 0 : index
    %c0_3 = arith.constant 0 : index
    %3 = vector.load %arg2[%c0_2, %c0_3] : memref<2x8xf32, #tpu.memory_space<vmem>>, vector<2x8xf32>
    %4 = vector.shape_cast %3 : vector<2x8xf32> to vector<1x2x8xf32>
    %5 = vector.broadcast %2 : vector<2x1x8xf32> to vector<2x2x8xf32>
    %6 = vector.broadcast %4 : vector<1x2x8xf32> to vector<2x2x8xf32>
    %7 = arith.mulf %5, %6 : vector<2x2x8xf32>
    %cst_4 = arith.constant dense<0.000000e+00> : vector<2x2xf32>
    %8 = vector.multi_reduction <add>, %7, %cst_4 [2] : vector<2x2x8xf32> to vector<2x2xf32>
    %cst_5 = arith.constant 0.000000e+00 : f32
    %9 = vector.broadcast %cst_5 : f32 to vector<2x2xf32>
    %10 = arith.cmpf ogt, %8, %9 : vector<2x2xf32>
    %cst_6 = arith.constant 0.00999999977 : f32
    %11 = vector.broadcast %cst_6 : f32 to vector<2x2xf32>
    %12 = arith.mulf %11, %8 : vector<2x2xf32>
    %13 = arith.select %10, %8, %12 : vector<2x2xi1>, vector<2x2xf32>
    %14 = vector.shape_cast %13 : vector<2x2xf32> to vector<2x1x2xf32>
    %c0_7 = arith.constant 0 : index
    %c0_8 = arith.constant 0 : index
    %15 = vector.load %arg3[%c0_7, %c0_8] : memref<8x2xf32, #tpu.memory_space<vmem>>, vector<8x2xf32>
    %16 = vector.shape_cast %15 : vector<8x2xf32> to vector<1x8x2xf32>
    %17 = vector.broadcast %14 : vector<2x1x2xf32> to vector<2x8x2xf32>
    %18 = vector.broadcast %16 : vector<1x8x2xf32> to vector<2x8x2xf32>
    %19 = arith.mulf %17, %18 : vector<2x8x2xf32>
    %cst_9 = arith.constant dense<0.000000e+00> : vector<2x8xf32>
    %20 = vector.multi_reduction <add>, %19, %cst_9 [2] : vector<2x8x2xf32> to vector<2x8xf32>
    %cst_10 = arith.constant 0.000000e+00 : f32
    %21 = vector.broadcast %cst_10 : f32 to vector<2x8xf32>
    %22 = arith.subf %21, %20 : vector<2x8xf32>
    %23 = math.exp %22 : vector<2x8xf32>
    %cst_11 = arith.constant 1.000000e+00 : f32
    %24 = vector.broadcast %cst_11 : f32 to vector<2x8xf32>
    %25 = arith.addf %24, %23 : vector<2x8xf32>
    %cst_12 = arith.constant 1.000000e+00 : f32
    %26 = vector.broadcast %cst_12 : f32 to vector<2x8xf32>
    %27 = arith.divf %26, %25 : vector<2x8xf32>
    %c0_13 = arith.constant 0 : index
    %c0_14 = arith.constant 0 : index
    %c0_15 = arith.constant 0 : index
    %28 = vector.load %arg1[%c0_13, %c0_14, %c0_15] : memref<2x8x256xf32, #tpu.memory_space<vmem>>, vector<2x8x256xf32>
    %29 = vector.shape_cast %27 : vector<2x8xf32> to vector<2x8x1xf32>
    %30 = vector.broadcast %29 : vector<2x8x1xf32> to vector<2x8x256xf32>
    %31 = arith.mulf %28, %30 : vector<2x8x256xf32>
    %c0_16 = arith.constant 0 : index
    %c0_17 = arith.constant 0 : index
    %c0_18 = arith.constant 0 : index
    %32 = vector.load %arg4[%c0_16, %c0_17, %c0_18] : memref<2x8x256xf32, #tpu.memory_space<vmem>>, vector<2x8x256xf32>
    tpu.vector_store %arg4[%c0_16, %c0_17, %c0_18], %31 {strides = array<i32>} : memref<2x8x256xf32, #tpu.memory_space<vmem>>, vector<2x8x256xf32>,
    return
  }
  func.func @transform_0(%arg0: i32) -> (i32, i32, i32) {
    %c0_i32 = arith.constant 0 : i32
    %c0_i32_0 = arith.constant 0 : i32
    %c0_i32_1 = arith.constant 0 : i32
    return %arg0, %c0_i32, %c0_i32_0 : i32, i32, i32
  }
  func.func @transform_1(%arg0: i32) -> (i32, i32) {
    %c0_i32 = arith.constant 0 : i32
    %c0_i32_0 = arith.constant 0 : i32
    %c0_i32_1 = arith.constant 0 : i32
    return %c0_i32, %c0_i32_0 : i32, i32
  }
  func.func @transform_2(%arg0: i32) -> (i32, i32) {
    %c0_i32 = arith.constant 0 : i32
    %c0_i32_0 = arith.constant 0 : i32
    %c0_i32_1 = arith.constant 0 : i32
    return %c0_i32, %c0_i32_0 : i32, i32
  }
  func.func @transform_3(%arg0: i32) -> (i32, i32, i32) {
    %c0_i32 = arith.constant 0 : i32
    %c0_i32_0 = arith.constant 0 : i32
    %c0_i32_1 = arith.constant 0 : i32
    return %arg0, %c0_i32, %c0_i32_0 : i32, i32, i32
  }
}

</mosaic_0001>

<llo_original>
// kernel: cb_forward.1
$region0: #{cb_forward.1}
  #allocation0 [shape = 'u32[]', space=smem, size = 0x4, offset = 0x4, fixed_abs, tag = 'smem constant byte address 0x4 - core index']
  #allocation1 [shape = 'u32[144,128]{1,0:T(1,128)}', space=vmem, size = 0x12000, scoped, tag = 'internal scratch']
  %s0 = inlined_call_operand.vmem [shape: f32[2,8,256], index: 0, kind: input, shape index: {}, may-alias: {0,3}]
  %s1 = inlined_call_operand.vmem [shape: f32[2,8], index: 1, kind: input, shape index: {}]
  %s2 = inlined_call_operand.vmem [shape: f32[8,2], index: 2, kind: input, shape index: {}]
  %s3 = inlined_call_operand.vmem [shape: f32[2,8,256], index: 3, kind: output, shape index: {}, may-alias: {0,3}]
  %s4 = sld [smem:[#allocation0]]
  $region22: #{cb_forward.1} parent=0
    _
  %s6 = ssub.s32 1, %s4
  %s7 = scalar_select 0, %s6, %s4
  // Predicated region
  $region2: #{cb_forward.1} parent=0 // pred_check
    _
  $region3: #{cb_forward.1} parent=0 // pred_check_branch
    %9 = sbr.rel (0) target = $region5
  $region4: #{cb_forward.1} parent=0 // pred_region
    _
  $region5: #{cb_forward.1} parent=0 // pred_fallthru
    _
  // Predicated region
  $region6: #{cb_forward.1} parent=0 // pred_check
    _
  $region7: #{cb_forward.1} parent=0 // pred_check_branch
    %11 = sbr.rel (0) target = $region9
  $region8: #{cb_forward.1} parent=0 // pred_region
    _
  $region9: #{cb_forward.1} parent=0 // pred_fallthru
    _
  // Predicated region
  $region10: #{cb_forward.1} parent=0 // pred_check
    _
  $region11: #{cb_forward.1} parent=0 // pred_check_branch
    %13 = sbr.rel (0) target = $region13
  $region12: #{cb_forward.1} parent=0 // pred_region
    _
  $region13: #{cb_forward.1} parent=0 // pred_fallthru
    _
  %v14 = vld [vmem:[%s0] sm:$0xff]
  %v15 = vld [vmem:[%s0 + $0x8] sm:$0xff]
  %v16 = vld [vmem:[%s0 + $0x10] sm:$0xff]
  %v17 = vld [vmem:[%s0 + $0x18] sm:$0xff]
  %v18 = vmax.f32 %v14, %v15
  %19 = vmax.xlane.f32.xlu0 %v18
  %v20 = vpop.xlane.xlu0 %19
  %v21 = vmax.f32 %v16, %v17
  %22 = vmax.xlane.f32.xlu0 %v21
  %v23 = vpop.xlane.xlu0 %22
  %v24 = vld [vmem:[%s1] sm:$0x3]
  %v26 = vlaneseq
  %v27 = vshrl.u32 %v26, 7
  %v28 = vsub.s32 0, %v27
  %v29 = vrot.slane %v24, %v28
  %31 = vbcast.lane.b32.xlu0 %v29, 256
  %v32 = vpop.permute.xlu0 %31
  %v33 = vlaneseq
  %v34 = vshrl.u32 %v33, 7
  %v35 = vsub.s32 1, %v34
  %v36 = vrot.slane %v24, %v35
  %38 = vbcast.lane.b32.xlu0 %v36, 256
  %v39 = vpop.permute.xlu0 %38
  %v42 = vmul.f32 %v20, %v32
  %v43 = vmul.f32 %v20, %v39
  %v44 = vmul.f32 %v23, %v32
  %v45 = vmul.f32 %v23, %v39
  %50 = vset.pattern.permute.xlu0 0
  %51 = vperm.xlu0 %50, %v42
  %v52 = vpop.permute.xlu0 %51
  %53 = vset.pattern.permute.xlu0 0
  %54 = vperm.xlu0 %53, %v43
  %v55 = vpop.permute.xlu0 %54
  %56 = vset.pattern.permute.xlu0 0
  %57 = vperm.xlu0 %56, %v44
  %v58 = vpop.permute.xlu0 %57
  %59 = vset.pattern.permute.xlu0 0
  %60 = vperm.xlu0 %59, %v45
  %v61 = vpop.permute.xlu0 %60
  %v62 = vlaneseq
  %v63 = vand.u32 %v62, 127
  %v64 = vlaneseq
  %v65 = vshrl.u32 %v64, 7
  %v66 = vsub.s32 %v63, %v65
  %v67 = vrot.slane %v52, %v66
  %v68 = vlaneseq
  %v69 = vshrl.u32 %v68, 7
  %v70 = vsub.s32 %v63, %v69
  %v71 = vrot.slane %v55, %v70
  %v72 = vlaneseq
  %v73 = vshrl.u32 %v72, 7
  %v74 = vsub.s32 %v63, %v73
  %v75 = vrot.slane %v58, %v74
  %v76 = vlaneseq
  %v77 = vshrl.u32 %v76, 7
  %v78 = vsub.s32 %v63, %v77
  %v79 = vrot.slane %v61, %v78
  %vm80 = vcmask 1041409
  %v81 = vsel %vm80, %v71, %v67
  %v82 = vsel %vm80, %v79, %v75
  %vm85 = vcmask 58368
  %v86 = vsel %vm85, %v81, 0.0
  %87 = vadd.xlane.f32.xlu0 %v86
  %v88 = vpop.xlane.xlu0 %87
  %v89 = vsel %vm85, %v82, 0.0
  %90 = vadd.xlane.f32.xlu0 %v89
  %v91 = vpop.xlane.xlu0 %90
  %vm92 = vcmp.gt.f32.partialorder %v88, 0.0
  %vm93 = vcmp.gt.f32.partialorder %v91, 0.0
  %v94 = vmul.f32 %v88, 0.01
  %v95 = vmul.f32 %v91, 0.01
  %v96 = vsel %vm92, %v88, %v94
  %v97 = vsel %vm93, %v91, %v95
  %v98 = vld [vmem:[%s2] sm:$0xff]
  %v100 = vlaneseq
  %v101 = vshrl.u32 %v100, 7
  %v102 = vsub.s32 0, %v101
  %v103 = vrot.slane %v98, %v102
  %105 = vbcast.lane.b32.xlu0 %v103, 256
  %v106 = vpop.permute.xlu0 %105
  %v107 = vlaneseq
  %v108 = vshrl.u32 %v107, 7
  %v109 = vsub.s32 1, %v108
  %v110 = vrot.slane %v98, %v109
  %112 = vbcast.lane.b32.xlu0 %v110, 256
  %v113 = vpop.permute.xlu0 %112
  %v114 = vlaneseq
  %v115 = vshrl.u32 %v114, 7
  %v116 = vsub.s32 2, %v115
  %v117 = vrot.slane %v98, %v116
  %119 = vbcast.lane.b32.xlu0 %v117, 256
  %v120 = vpop.permute.xlu0 %119
  %v121 = vlaneseq
  %v122 = vshrl.u32 %v121, 7
  %v123 = vsub.s32 3, %v122
  %v124 = vrot.slane %v98, %v123
  %126 = vbcast.lane.b32.xlu0 %v124, 256
  %v127 = vpop.permute.xlu0 %126
  %v128 = vlaneseq
  %v129 = vshrl.u32 %v128, 7
  %v130 = vsub.s32 4, %v129
  %v131 = vrot.slane %v98, %v130
  %133 = vbcast.lane.b32.xlu0 %v131, 256
  %v134 = vpop.permute.xlu0 %133
  %v135 = vlaneseq
  %v136 = vshrl.u32 %v135, 7
  %v137 = vsub.s32 5, %v136
  %v138 = vrot.slane %v98, %v137
  %140 = vbcast.lane.b32.xlu0 %v138, 256
  %v141 = vpop.permute.xlu0 %140
  %v142 = vlaneseq
  %v143 = vshrl.u32 %v142, 7
  %v144 = vsub.s32 6, %v143
  %v145 = vrot.slane %v98, %v144
  %147 = vbcast.lane.b32.xlu0 %v145, 256
  %v148 = vpop.permute.xlu0 %147
  %v149 = vlaneseq
  %v150 = vshrl.u32 %v149, 7
  %v151 = vsub.s32 7, %v150
  %v152 = vrot.slane %v98, %v151
  %154 = vbcast.lane.b32.xlu0 %v152, 256
  %v155 = vpop.permute.xlu0 %154
  %v164 = vmul.f32 %v96, %v106
  %v165 = vmul.f32 %v96, %v113
  %v166 = vmul.f32 %v96, %v120
  %v167 = vmul.f32 %v96, %v127
  %v168 = vmul.f32 %v96, %v134
  %v169 = vmul.f32 %v96, %v141
  %v170 = vmul.f32 %v96, %v148
  %v171 = vmul.f32 %v96, %v155
  %v172 = vmul.f32 %v97, %v106
  %v173 = vmul.f32 %v97, %v113
  %v174 = vmul.f32 %v97, %v120
  %v175 = vmul.f32 %v97, %v127
  %v176 = vmul.f32 %v97, %v134
  %v177 = vmul.f32 %v97, %v141
  %v178 = vmul.f32 %v97, %v148
  %v179 = vmul.f32 %v97, %v155
  %196 = vset.pattern.permute.xlu0 0
  %197 = vperm.xlu0 %196, %v164
  %v198 = vpop.permute.xlu0 %197
  %199 = vset.pattern.permute.xlu0 0
  %200 = vperm.xlu0 %199, %v165
  %v201 = vpop.permute.xlu0 %200
  %202 = vset.pattern.permute.xlu0 0
  %203 = vperm.xlu0 %202, %v166
  %v204 = vpop.permute.xlu0 %203
  %205 = vset.pattern.permute.xlu0 0
  %206 = vperm.xlu0 %205, %v167
  %v207 = vpop.permute.xlu0 %206
  %208 = vset.pattern.permute.xlu0 0
  %209 = vperm.xlu0 %208, %v168
  %v210 = vpop.permute.xlu0 %209
  %211 = vset.pattern.permute.xlu0 0
  %212 = vperm.xlu0 %211, %v169
  %v213 = vpop.permute.xlu0 %212
  %214 = vset.pattern.permute.xlu0 0
  %215 = vperm.xlu0 %214, %v170
  %v216 = vpop.permute.xlu0 %215
  %217 = vset.pattern.permute.xlu0 0
  %218 = vperm.xlu0 %217, %v171
  %v219 = vpop.permute.xlu0 %218
  %220 = vset.pattern.permute.xlu0 0
  %221 = vperm.xlu0 %220, %v172
  %v222 = vpop.permute.xlu0 %221
  %223 = vset.pattern.permute.xlu0 0
  %224 = vperm.xlu0 %223, %v173
  %v225 = vpop.permute.xlu0 %224
  %226 = vset.pattern.permute.xlu0 0
  %227 = vperm.xlu0 %226, %v174
  %v228 = vpop.permute.xlu0 %227
  %229 = vset.pattern.permute.xlu0 0
  %230 = vperm.xlu0 %229, %v175
  %v231 = vpop.permute.xlu0 %230
  %232 = vset.pattern.permute.xlu0 0
  %233 = vperm.xlu0 %232, %v176
  %v234 = vpop.permute.xlu0 %233
  %235 = vset.pattern.permute.xlu0 0
  %236 = vperm.xlu0 %235, %v177
  %v237 = vpop.permute.xlu0 %236
  %238 = vset.pattern.permute.xlu0 0
  %239 = vperm.xlu0 %238, %v178
  %v240 = vpop.permute.xlu0 %239
  %241 = vset.pattern.permute.xlu0 0
  %242 = vperm.xlu0 %241, %v179
  %v243 = vpop.permute.xlu0 %242
  %v244 = vlaneseq
  %v245 = vshrl.u32 %v244, 7
  %v246 = vsub.s32 %v63, %v245
  %v247 = vrot.slane %v198, %v246
  %v248 = vlaneseq
  %v249 = vshrl.u32 %v248, 7
  %v250 = vsub.s32 %v63, %v249
  %v251 = vrot.slane %v201, %v250
  %v252 = vlaneseq
  %v253 = vshrl.u32 %v252, 7
  %v254 = vsub.s32 %v63, %v253
  %v255 = vrot.slane %v204, %v254
  %v256 = vlaneseq
  %v257 = vshrl.u32 %v256, 7
  %v258 = vsub.s32 %v63, %v257
  %v259 = vrot.slane %v207, %v258
  %v260 = vlaneseq
  %v261 = vshrl.u32 %v260, 7
  %v262 = vsub.s32 %v63, %v261
  %v263 = vrot.slane %v210, %v262
  %v264 = vlaneseq
  %v265 = vshrl.u32 %v264, 7
  %v266 = vsub.s32 %v63, %v265
  %v267 = vrot.slane %v213, %v266
  %v268 = vlaneseq
  %v269 = vshrl.u32 %v268, 7
  %v270 = vsub.s32 %v63, %v269
  %v271 = vrot.slane %v216, %v270
  %v272 = vlaneseq
  %v273 = vshrl.u32 %v272, 7
  %v274 = vsub.s32 %v63, %v273
  %v275 = vrot.slane %v219, %v274
  %v276 = vlaneseq
  %v277 = vshrl.u32 %v276, 7
  %v278 = vsub.s32 %v63, %v277
  %v279 = vrot.slane %v222, %v278
  %v280 = vlaneseq
  %v281 = vshrl.u32 %v280, 7
  %v282 = vsub.s32 %v63, %v281
  %v283 = vrot.slane %v225, %v282
  %v284 = vlaneseq
  %v285 = vshrl.u32 %v284, 7
  %v286 = vsub.s32 %v63, %v285
  %v287 = vrot.slane %v228, %v286
  %v288 = vlaneseq
  %v289 = vshrl.u32 %v288, 7
  %v290 = vsub.s32 %v63, %v289
  %v291 = vrot.slane %v231, %v290
  %v292 = vlaneseq
  %v293 = vshrl.u32 %v292, 7
  %v294 = vsub.s32 %v63, %v293
  %v295 = vrot.slane %v234, %v294
  %v296 = vlaneseq
  %v297 = vshrl.u32 %v296, 7
  %v298 = vsub.s32 %v63, %v297
  %v299 = vrot.slane %v237, %v298
  %v300 = vlaneseq
  %v301 = vshrl.u32 %v300, 7
  %v302 = vsub.s32 %v63, %v301
  %v303 = vrot.slane %v240, %v302
  %v304 = vlaneseq
  %v305 = vshrl.u32 %v304, 7
  %v306 = vsub.s32 %v63, %v305
  %v307 = vrot.slane %v243, %v306
  %v308 = vsel %vm80, %v251, %v247
  %vm309 = vcmask 1042434
  %v310 = vsel %vm309, %v255, %v308
  %vm311 = vcmask 1043459
  %v312 = vsel %vm311, %v259, %v310
  %vm313 = vcmask 1044484
  %v314 = vsel %vm313, %v263, %v312
  %vm315 = vcmask 1045509
  %v316 = vsel %vm315, %v267, %v314
  %vm317 = vcmask 1046534
  %v318 = vsel %vm317, %v271, %v316
  %vm319 = vcmask 1047559
  %v320 = vsel %vm319, %v275, %v318
  %v321 = vsel %vm80, %v283, %v279
  %v322 = vsel %vm309, %v287, %v321
  %v323 = vsel %vm311, %v291, %v322
  %v324 = vsel %vm313, %v295, %v323
  %v325 = vsel %vm315, %v299, %v324
  %v326 = vsel %vm317, %v303, %v325
  %v327 = vsel %vm319, %v307, %v326
  %vm330 = vcmask 15360
  %v331 = vsel %vm330, %v320, 0.0
  %332 = vadd.xlane.f32.xlu0 %v331
  %v333 = vpop.xlane.xlu0 %332
  %v334 = vsel %vm330, %v327, 0.0
  %335 = vadd.xlane.f32.xlu0 %v334
  %v336 = vpop.xlane.xlu0 %335
  %v337 = vsub.f32 0.0, %v333
  %v338 = vsub.f32 0.0, %v336
  %v339 = vmul.f32 %v337, 1.442695
  %v340 = vpow.pop %v339
  %v341 = vmul.f32 %v338, 1.442695
  %v342 = vpow.pop %v341
  %v343 = vadd.f32 %v340, 1.0
  %v344 = vadd.f32 %v342, 1.0
  %v345 = vrcp.pop %v343
  %v346 = vmul.f32 1.0, %v345
  %v347 = vrcp.pop %v344
  %v348 = vmul.f32 1.0, %v347
  %v349 = vmul.f32 %v14, %v346
  %v350 = vmul.f32 %v15, %v346
  %v351 = vmul.f32 %v16, %v348
  %v352 = vmul.f32 %v17, %v348
  %353 = vst [vmem:[%s3] sm:$0xff] %v349
  %354 = vst [vmem:[%s3 + $0x8] sm:$0xff] %v350
  %355 = vst [vmem:[%s3 + $0x10] sm:$0xff] %v351
  %356 = vst [vmem:[%s3 + $0x18] sm:$0xff] %v352
  // Predicated region
  $region14: #{cb_forward.1} parent=0 // pred_check
    _
  $region15: #{cb_forward.1} parent=0 // pred_check_branch
    %358 = sbr.rel (0) target = $region17
  $region16: #{cb_forward.1} parent=0 // pred_region
    _
  $region17: #{cb_forward.1} parent=0 // pred_fallthru
    _
  // Predicated region
  $region18: #{cb_forward.1} parent=0 // pred_check
    _
  $region19: #{cb_forward.1} parent=0 // pred_check_branch
    %360 = sbr.rel (0) target = $region21
  $region20: #{cb_forward.1} parent=0 // pred_region
    _
  $region21: #{cb_forward.1} parent=0 // pred_fallthru
    _

</llo_original>
